<compile_context>
chip_gen: v6e
topology: v6e:2x2x1
jax: 0.10.0
libtpu: 0.0.40
codegen_flags: <defaults>
</compile_context>

<pallas_src>
import functools
import numpy as np
import jax
import jax.numpy as jnp
from jax.experimental import pallas as pl
from jax.experimental.pallas import tpu as pltpu


_LANE = 128        # pad class / target axes to multiples of the lane width
_SUBLANE = 8       # pad query-row axis to multiples of the sublane width
_MAX_TILE_N = 256  # rows per grid step (>= 256 amortizes per-step overhead)
_NEG_PAD = -1e9    # logit pad value: exp underflows to 0, sigmoid -> 0


def _round_up(x, m):
    return ((int(x) + m - 1) // m) * m


def _make_cost_kernel(cost_class_w, cost_bbox_w, cost_giou_w,
                      focal_loss, focal_alpha):
    """Per-[TILE_N, T_PAD] tile: class cost + L1 cdist + (-GIoU), weighted sum."""

    def kernel(logits_ref, boxes_ref, onehot_ref, tgtf_ref, cost_ref):
        logits = logits_ref[...]            # [TN, C_PAD]   f32
        onehot = onehot_ref[...]            # [C_PAD, T_PAD] f32 one-hot labels

        if focal_loss:
            # prob = sigmoid(x); -log(prob) = softplus(-x); -log(1-prob) = softplus(x).
            # Both softplus values share t = log(1 + exp(-|x|)); pow(., 2.0) is
            # replaced by an explicit square (float-exponent pow would burn two
            # EUP transcendentals per element on the single EUP port).
            prob = jax.nn.sigmoid(logits)
            omp = 1.0 - prob
            t = jnp.log(1.0 + jnp.exp(-jnp.abs(logits)))
            log_p = jnp.maximum(-logits, 0.0) + t      # -log(sigmoid(x))
            log_1mp = jnp.maximum(logits, 0.0) + t     # -log(1 - sigmoid(x))
            pos = focal_alpha * (omp * omp) * log_p
            neg = (1.0 - focal_alpha) * (prob * prob) * log_1mp
            # gather prob[:, tgt_ids] expressed as an MXU matmul with a one-hot
            cost_class = jnp.dot(pos - neg, onehot,
                                 preferred_element_type=jnp.float32)
        else:
            m = jnp.max(logits, axis=-1, keepdims=True)
            e = jnp.exp(logits - m)
            denom = jnp.sum(e, axis=-1, keepdims=True)     # [TN, 1] > 0, safe
            # normalize AFTER the contraction: an [TN,T] * [TN,1] multiply with
            # an approx EUP reciprocal instead of an [TN,C] divide.
            unnorm = jnp.dot(e, onehot, preferred_element_type=jnp.float32)
            cost_class = -unnorm * pl.reciprocal(denom, approx=True)

        ob = boxes_ref[...]                 # [TN, 4] cxcywh predictions
        ocx, ocy = ob[:, 0:1], ob[:, 1:2]
        ow, oh = ob[:, 2:3], ob[:, 3:4]

        tf = tgtf_ref[...]                  # [8, T_PAD] precomputed target feats
        tx, ty = tf[0:1, :], tf[1:2, :]     # xywh top-left corner
        tw, th = tf[2:3, :], tf[3:4, :]
        tx1, ty1 = tf[4:5, :], tf[5:6, :]   # xyxy bottom-right (precomputed)
        area_t = tf[6:7, :]                 # target area (precomputed)

        # torch.cdist(out_bbox, tgt_bbox, p=1) on the *raw* box parameters
        cost = cost_bbox_w * (jnp.abs(ocx - tx) + jnp.abs(ocy - ty)
                              + jnp.abs(ow - tw) + jnp.abs(oh - th))
        cost = cost + cost_class_w * cost_class

        # box_cxcywh_to_xyxy (predictions)
        hw, hh = 0.5 * ow, 0.5 * oh
        ox0, oy0 = ocx - hw, ocy - hh
        ox1, oy1 = ocx + hw, ocy + hh
        area_o = ow * oh                    # [TN, 1]

        inter_w = jnp.maximum(jnp.minimum(ox1, tx1) - jnp.maximum(ox0, tx), 0.0)
        inter_h = jnp.maximum(jnp.minimum(oy1, ty1) - jnp.maximum(oy0, ty), 0.0)
        inter = inter_w * inter_h
        union = area_o + area_t - inter

        enc_w = jnp.maximum(jnp.maximum(ox1, tx1) - jnp.minimum(ox0, tx), 0.0)
        enc_h = jnp.maximum(jnp.maximum(oy1, ty1) - jnp.minimum(oy0, ty), 0.0)
        area_c = enc_w * enc_h

        # Full-precision divides (not approx reciprocal) so degenerate boxes
        # keep the original 0/0 -> NaN semantics that drives the NaN fallback.
        iou = inter / union
        giou = iou - (area_c - union) / area_c
        cost = cost + cost_giou_w * (-giou)

        cost_ref[...] = cost

    return kernel


@functools.lru_cache(maxsize=None)
def _build_cost_fn(B, Q, C, c_pad, t_pad, tile_n, n_pad,
                   cost_class, cost_bbox, cost_giou, focal_loss, focal_alpha):
    """One compiled pallas_call per static (shape-bucket, weights) key."""
    kernel = _make_cost_kernel(cost_class, cost_bbox, cost_giou,
                               focal_loss, focal_alpha)
    grid = (n_pad // tile_n,)

    flops = 2 * n_pad * c_pad * t_pad + 32 * n_pad * t_pad
    transcendentals = (3 if focal_loss else 1) * n_pad * c_pad
    bytes_accessed = 4 * (n_pad * c_pad + n_pad * 4
                          + c_pad * t_pad + 8 * t_pad + n_pad * t_pad)

    cost_call = pl.pallas_call(
        kernel,
        out_shape=jax.ShapeDtypeStruct((n_pad, t_pad), jnp.float32),
        grid=grid,
        in_specs=[
            pl.BlockSpec((tile_n, c_pad), lambda i: (i, 0)),   # logits (tiled N)
            pl.BlockSpec((tile_n, 4), lambda i: (i, 0)),       # boxes  (tiled N)
            pl.BlockSpec((c_pad, t_pad), lambda i: (0, 0)),    # one-hot (replicated)
            pl.BlockSpec((8, t_pad), lambda i: (0, 0)),        # tgt feats (replicated)
        ],
        out_specs=pl.BlockSpec((tile_n, t_pad), lambda i: (i, 0)),
        compiler_params=pltpu.CompilerParams(
            dimension_semantics=("parallel",)),
        cost_estimate=pl.CostEstimate(flops=flops,
                                      transcendentals=transcendentals,
                                      bytes_accessed=bytes_accessed),
    )

    def run(pred_logits, pred_boxes, onehot_t, tgt_feats):
        n = B * Q
        logits = pred_logits.reshape(n, C).astype(jnp.float32)
        boxes = pred_boxes.reshape(n, 4).astype(jnp.float32)
        # class padding uses a large negative logit so the softmax denominator
        # and sigmoid probabilities of padded classes are exactly 0.
        logits = jnp.pad(logits, ((0, n_pad - n), (0, c_pad - C)),
                         constant_values=_NEG_PAD)
        boxes = jnp.pad(boxes, ((0, n_pad - n), (0, 0)))
        return cost_call(logits, boxes, onehot_t, tgt_feats)

    return jax.jit(run)


def _linear_sum_assignment(cost):
    """scipy if available, otherwise exact brute force (tiny problems only)."""
    try:
        from scipy.optimize import linear_sum_assignment as lsa
        return lsa(cost)
    except ImportError:
        import itertools
        nq, nt = cost.shape
        assert nt <= nq, "brute-force fallback assumes num_targets <= num_queries"
        best_val, best_rows = None, None
        cols = list(range(nt))
        for rows in itertools.permutations(range(nq), nt):
            val = cost[list(rows), cols].sum()
            if best_val is None or val < best_val:
                best_val, best_rows = val, rows
        rows = np.asarray(best_rows)
        cols = np.arange(nt)
        order = np.argsort(rows)
        return rows[order], cols[order]


class HungarianMatcher:
    """JAX/Pallas re-implementation of trackformer's HungarianMatcher."""

    def __init__(self, cost_class=1.0, cost_bbox=1.0, cost_giou=1.0,
                 focal_loss=False, focal_alpha=0.25):
        assert cost_class != 0 or cost_bbox != 0 or cost_giou != 0, \
            "all costs cant be 0"
        self.cost_class = float(cost_class)
        self.cost_bbox = float(cost_bbox)
        self.cost_giou = float(cost_giou)
        self.focal_loss = bool(focal_loss)
        self.focal_alpha = float(focal_alpha)

    def cost_matrix(self, pred_logits, pred_boxes, tgt_ids, tgt_bbox):
        """Returns the [B, Q, T] cost matrix as a numpy array (NaN fixup applied)."""
        B, Q, C = pred_logits.shape
        N = B * Q
        T = int(tgt_ids.shape[0])

        # static buckets -> single compile per bucket, lane-dense [N, T_pad] output
        c_pad = _round_up(max(C, 1), _LANE)
        t_pad = _round_up(max(T, 1), _LANE)
        tile_n = min(_MAX_TILE_N, _round_up(N, _SUBLANE))
        n_pad = _round_up(N, tile_n)

        # tiny target-side tensors are built on the host (numpy), so varying T
        # never re-traces any device computation beyond the fixed bucket.
        ids_np = np.asarray(jax.device_get(tgt_ids)).astype(np.int64)
        tb_np = np.asarray(jax.device_get(tgt_bbox)).astype(np.float32)

        onehot_t = np.zeros((c_pad, t_pad), np.float32)       # [C_pad, T_pad]
        if T > 0:
            onehot_t[ids_np, np.arange(T)] = 1.0

        tgt_feats = np.zeros((8, t_pad), np.float32)          # [8, T_pad]
        if T > 0:
            x, y = tb_np[:, 0], tb_np[:, 1]
            w, h = tb_np[:, 2], tb_np[:, 3]
            tgt_feats[0, :T] = x
            tgt_feats[1, :T] = y
            tgt_feats[2, :T] = w
            tgt_feats[3, :T] = h
            tgt_feats[4, :T] = x + w          # xyxy bottom-right x
            tgt_feats[5, :T] = y + h          # xyxy bottom-right y
            tgt_feats[6, :T] = w * h          # target area

        fn = _build_cost_fn(B, Q, C, c_pad, t_pad, tile_n, n_pad,
                            self.cost_class, self.cost_bbox, self.cost_giou,
                            self.focal_loss, self.focal_alpha)
        cost_pad = fn(pred_logits, pred_boxes,
                      jnp.asarray(onehot_t), jnp.asarray(tgt_feats))
        cost_pad = np.asarray(jax.block_until_ready(cost_pad))

        cost = cost_pad[:N, :T].reshape(B, Q, T).copy()
        # `if torch.isnan(cost_matrix).any(): cost_matrix[:, :, :] = 1.0`
        # done on the host copy we need anyway (no extra XLA pass).
        if cost.size and np.isnan(cost).any():
            cost[...] = 1.0
        return cost

    def __call__(self, outputs, targets):
        pred_logits = outputs['pred_logits']
        pred_boxes = outputs['pred_boxes']
        tgt_ids = jnp.concatenate([t['labels'] for t in targets])
        tgt_bbox = jnp.concatenate([t['boxes'] for t in targets])

        cost_np = self.cost_matrix(pred_logits, pred_boxes, tgt_ids, tgt_bbox)

        sizes = [int(t['boxes'].shape[0]) for t in targets]
        offs = np.cumsum([0] + sizes)

        # TODO(synk): track_query_match_ids / track_queries_match_mask cost
        # surgery is host-side scalar index editing; synthetic targets omit it.

        indices = []
        for i in range(len(targets)):
            c = cost_np[i, :, offs[i]:offs[i + 1]]
            if np.any(np.isneginf(c) | np.isnan(c)):
                print(c)
            else:
                indices.append(_linear_sum_assignment(c))
        return [(np.asarray(i, dtype=np.int64), np.asarray(j, dtype=np.int64))
                for i, j in indices]


def _reference_cost(pred_logits, pred_boxes, tgt_ids, tgt_bbox,
                    cost_class_w, cost_bbox_w, cost_giou_w,
                    focal_loss, focal_alpha):
    """Pure numpy reference of the torch module's cost matrix ([N, T])."""
    C = pred_logits.shape[-1]
    logits = np.asarray(pred_logits, np.float64).reshape(-1, C)
    boxes = np.asarray(pred_boxes, np.float64).reshape(-1, 4)
    ids = np.asarray(tgt_ids).astype(np.int64)
    tb = np.asarray(tgt_bbox, np.float64)

    if focal_loss:
        prob = 1.0 / (1.0 + np.exp(-logits))
        gamma = 2.0
        neg = (1 - focal_alpha) * prob ** gamma * -np.log(1 - prob + 1e-8)
        pos = focal_alpha * (1 - prob) ** gamma * -np.log(prob + 1e-8)
        cost_class = pos[:, ids] - neg[:, ids]
    else:
        e = np.exp(logits - logits.max(-1, keepdims=True))
        prob = e / e.sum(-1, keepdims=True)
        cost_class = -prob[:, ids]

    cost_bbox = np.abs(boxes[:, None, :] - tb[None, :, :]).sum(-1)

    px0 = boxes[:, 0] - 0.5 * boxes[:, 2]
    py0 = boxes[:, 1] - 0.5 * boxes[:, 3]
    px1 = boxes[:, 0] + 0.5 * boxes[:, 2]
    py1 = boxes[:, 1] + 0.5 * boxes[:, 3]
    tx0, ty0 = tb[:, 0], tb[:, 1]
    tx1, ty1 = tb[:, 0] + tb[:, 2], tb[:, 1] + tb[:, 3]

    area_p = (px1 - px0) * (py1 - py0)
    area_t = (tx1 - tx0) * (ty1 - ty0)
    iw = np.clip(np.minimum(px1[:, None], tx1[None, :])
                 - np.maximum(px0[:, None], tx0[None, :]), 0, None)
    ih = np.clip(np.minimum(py1[:, None], ty1[None, :])
                 - np.maximum(py0[:, None], ty0[None, :]), 0, None)
    inter = iw * ih
    union = area_p[:, None] + area_t[None, :] - inter
    iou = inter / union
    cw = np.clip(np.maximum(px1[:, None], tx1[None, :])
                 - np.minimum(px0[:, None], tx0[None, :]), 0, None)
    ch = np.clip(np.maximum(py1[:, None], ty1[None, :])
                 - np.minimum(py0[:, None], ty0[None, :]), 0, None)
    area_c = cw * ch
    giou = iou - (area_c - union) / area_c

    return (cost_bbox_w * cost_bbox + cost_class_w * cost_class
            + cost_giou_w * (-giou))


if __name__ == "__main__":
    key = jax.random.PRNGKey(0)
    B, Q, C = 2, 8, 16          # batch, queries, classes
    sizes = [3, 4]              # num target boxes per batch element

    k1, k2, k3 = jax.random.split(key, 3)
    pred_logits = jax.random.normal(k1, (B, Q, C), dtype=jnp.float32)
    pred_boxes = jax.nn.sigmoid(jax.random.normal(k2, (B, Q, 4),
                                                  dtype=jnp.float32))

    targets = []
    for bi, n in enumerate(sizes):
        kk = jax.random.fold_in(k3, bi)
        ka, kb, kc = jax.random.split(kk, 3)
        labels = jax.random.randint(ka, (n,), 0, C, dtype=jnp.int32)
        xy = jax.random.uniform(kb, (n, 2), minval=0.05, maxval=0.5)
        wh = jax.random.uniform(kc, (n, 2), minval=0.05, maxval=0.4)
        boxes = jnp.concatenate([xy, wh], axis=-1)   # xywh (top-left, size)
        targets.append({'labels': labels, 'boxes': boxes})

    outputs = {'pred_logits': pred_logits, 'pred_boxes': pred_boxes}
    tgt_ids = jnp.concatenate([t['labels'] for t in targets])
    tgt_bbox = jnp.concatenate([t['boxes'] for t in targets])

    for focal in (False, True):
        matcher = HungarianMatcher(cost_class=1.0, cost_bbox=1.0,
                                   cost_giou=1.0, focal_loss=focal)

        cost = matcher.cost_matrix(pred_logits, pred_boxes, tgt_ids, tgt_bbox)
        ref = _reference_cost(pred_logits, pred_boxes, tgt_ids, tgt_bbox,
                              matcher.cost_class, matcher.cost_bbox,
                              matcher.cost_giou, focal,
                              matcher.focal_alpha).reshape(B, Q, -1)
        err = np.abs(cost - ref).max()
        assert np.allclose(cost, ref, rtol=5e-2, atol=5e-2), \
            f"cost mismatch (focal={focal}): max abs err {err}"

        indices = matcher(outputs, targets)
        assert len(indices) == B
        for (idx_i, idx_j), n in zip(indices, sizes):
            assert idx_i.dtype == np.int64 and idx_j.dtype == np.int64
            assert len(idx_i) == len(idx_j) == min(Q, n)

    print("KERNEL_OK")
</pallas_src>

<mosaic_0001>
module attributes {stable_mosaic.version = 11 : i64} {
  func.func @kernel(%arg0: i32, %arg1: memref<16x128xf32, #tpu.memory_space<vmem>>, %arg2: memref<16x4xf32, #tpu.memory_space<vmem>>, %arg3: memref<128x128xf32, #tpu.memory_space<vmem>>, %arg4: memref<8x128xf32, #tpu.memory_space<vmem>>, %arg5: memref<16x128xf32, #tpu.memory_space<vmem>>) attributes {dimension_semantics = [#tpu.dimension_semantics<parallel>], iteration_bounds = array<i64: 1>, scalar_prefetch = 0 : i64, scratch_operands = 0 : i64, tpu.core_type = #tpu.core_type<tc>, window_params = [{transform_indices = @transform_0, window_bounds = array<i64: 16, 128>}, {transform_indices = @transform_1, window_bounds = array<i64: 16, 4>}, {pipeline_mode = #tpu.pipeline_mode<synchronous>, transform_indices = @transform_2, window_bounds = array<i64: 128, 128>}, {pipeline_mode = #tpu.pipeline_mode<synchronous>, transform_indices = @transform_3, window_bounds = array<i64: 8, 128>}, {transform_indices = @transform_4, window_bounds = array<i64: 16, 128>}]} {
    %c0 = arith.constant 0 : index
    %c0_0 = arith.constant 0 : index
    %0 = vector.load %arg1[%c0, %c0_0] : memref<16x128xf32, #tpu.memory_space<vmem>>, vector<16x128xf32>
    %c0_1 = arith.constant 0 : index
    %c0_2 = arith.constant 0 : index
    %1 = vector.load %arg3[%c0_1, %c0_2] : memref<128x128xf32, #tpu.memory_space<vmem>>, vector<128x128xf32>
    %cst = arith.constant dense<0xFF800000> : vector<16xf32>
    %2 = vector.multi_reduction <maximumf>, %0, %cst [1] : vector<16x128xf32> to vector<16xf32>
    %3 = vector.shape_cast %2 : vector<16xf32> to vector<16x1xf32>
    %4 = vector.broadcast %3 : vector<16x1xf32> to vector<16x128xf32>
    %5 = arith.subf %0, %4 : vector<16x128xf32>
    %6 = math.exp %5 : vector<16x128xf32>
    %cst_3 = arith.constant dense<0.000000e+00> : vector<16xf32>
    %7 = vector.multi_reduction <add>, %6, %cst_3 [1] : vector<16x128xf32> to vector<16xf32>
    %8 = vector.shape_cast %7 : vector<16xf32> to vector<16x1xf32>
    %cst_4 = arith.constant dense<0.000000e+00> : vector<16x128xf32>
    %9 = tpu.matmul %6, %1, %cst_4 {dimension_numbers = #tpu.dot_dimension_numbers<[1], [0], [0], [1], [0, 0, 1, 1], [], []>} : vector<16x128xf32>, vector<128x128xf32>, vector<16x128xf32> -> vector<16x128xf32>
    %cst_5 = arith.constant 0.000000e+00 : f32
    %10 = vector.broadcast %cst_5 : f32 to vector<16x128xf32>
    %11 = arith.subf %10, %9 : vector<16x128xf32>
    %12 = tpu.reciprocal %8 {approx = true} : vector<16x1xf32> -> vector<16x1xf32>
    %13 = vector.broadcast %12 : vector<16x1xf32> to vector<16x128xf32>
    %14 = arith.mulf %11, %13 : vector<16x128xf32>
    %c0_6 = arith.constant 0 : index
    %c0_7 = arith.constant 0 : index
    %15 = vector.load %arg2[%c0_6, %c0_7] : memref<16x4xf32, #tpu.memory_space<vmem>>, vector<16x4xf32>
    %16 = vector.extract_strided_slice %15 {offsets = [0, 0], sizes = [16, 1], strides = [1, 1]} : vector<16x4xf32> to vector<16x1xf32>
    %17 = vector.extract_strided_slice %15 {offsets = [0, 1], sizes = [16, 1], strides = [1, 1]} : vector<16x4xf32> to vector<16x1xf32>
    %18 = vector.extract_strided_slice %15 {offsets = [0, 2], sizes = [16, 1], strides = [1, 1]} : vector<16x4xf32> to vector<16x1xf32>
    %19 = vector.extract_strided_slice %15 {offsets = [0, 3], sizes = [16, 1], strides = [1, 1]} : vector<16x4xf32> to vector<16x1xf32>
    %c0_8 = arith.constant 0 : index
    %c0_9 = arith.constant 0 : index
    %20 = vector.load %arg4[%c0_8, %c0_9] : memref<8x128xf32, #tpu.memory_space<vmem>>, vector<8x128xf32>
    %21 = vector.extract_strided_slice %20 {offsets = [0, 0], sizes = [1, 128], strides = [1, 1]} : vector<8x128xf32> to vector<1x128xf32>
    %22 = vector.extract_strided_slice %20 {offsets = [1, 0], sizes = [1, 128], strides = [1, 1]} : vector<8x128xf32> to vector<1x128xf32>
    %23 = vector.extract_strided_slice %20 {offsets = [2, 0], sizes = [1, 128], strides = [1, 1]} : vector<8x128xf32> to vector<1x128xf32>
    %24 = vector.extract_strided_slice %20 {offsets = [3, 0], sizes = [1, 128], strides = [1, 1]} : vector<8x128xf32> to vector<1x128xf32>
    %25 = vector.extract_strided_slice %20 {offsets = [4, 0], sizes = [1, 128], strides = [1, 1]} : vector<8x128xf32> to vector<1x128xf32>
    %26 = vector.extract_strided_slice %20 {offsets = [5, 0], sizes = [1, 128], strides = [1, 1]} : vector<8x128xf32> to vector<1x128xf32>
    %27 = vector.extract_strided_slice %20 {offsets = [6, 0], sizes = [1, 128], strides = [1, 1]} : vector<8x128xf32> to vector<1x128xf32>
    %28 = vector.broadcast %16 : vector<16x1xf32> to vector<16x128xf32>
    %29 = vector.broadcast %21 : vector<1x128xf32> to vector<16x128xf32>
    %30 = arith.subf %28, %29 : vector<16x128xf32>
    %31 = math.absf %30 : vector<16x128xf32>
    %32 = vector.broadcast %17 : vector<16x1xf32> to vector<16x128xf32>
    %33 = vector.broadcast %22 : vector<1x128xf32> to vector<16x128xf32>
    %34 = arith.subf %32, %33 : vector<16x128xf32>
    %35 = math.absf %34 : vector<16x128xf32>
    %36 = arith.addf %31, %35 : vector<16x128xf32>
    %37 = vector.broadcast %18 : vector<16x1xf32> to vector<16x128xf32>
    %38 = vector.broadcast %23 : vector<1x128xf32> to vector<16x128xf32>
    %39 = arith.subf %37, %38 : vector<16x128xf32>
    %40 = math.absf %39 : vector<16x128xf32>
    %41 = arith.addf %36, %40 : vector<16x128xf32>
    %42 = vector.broadcast %19 : vector<16x1xf32> to vector<16x128xf32>
    %43 = vector.broadcast %24 : vector<1x128xf32> to vector<16x128xf32>
    %44 = arith.subf %42, %43 : vector<16x128xf32>
    %45 = math.absf %44 : vector<16x128xf32>
    %46 = arith.addf %41, %45 : vector<16x128xf32>
    %cst_10 = arith.constant 1.000000e+00 : f32
    %47 = vector.broadcast %cst_10 : f32 to vector<16x128xf32>
    %48 = arith.mulf %47, %46 : vector<16x128xf32>
    %cst_11 = arith.constant 1.000000e+00 : f32
    %49 = vector.broadcast %cst_11 : f32 to vector<16x128xf32>
    %50 = arith.mulf %49, %14 : vector<16x128xf32>
    %51 = arith.addf %48, %50 : vector<16x128xf32>
    %cst_12 = arith.constant 5.000000e-01 : f32
    %52 = vector.broadcast %cst_12 : f32 to vector<16x1xf32>
    %53 = arith.mulf %52, %18 : vector<16x1xf32>
    %cst_13 = arith.constant 5.000000e-01 : f32
    %54 = vector.broadcast %cst_13 : f32 to vector<16x1xf32>
    %55 = arith.mulf %54, %19 : vector<16x1xf32>
    %56 = arith.subf %16, %53 : vector<16x1xf32>
    %57 = arith.subf %17, %55 : vector<16x1xf32>
    %58 = arith.addf %16, %53 : vector<16x1xf32>
    %59 = arith.addf %17, %55 : vector<16x1xf32>
    %60 = arith.mulf %18, %19 : vector<16x1xf32>
    %61 = vector.broadcast %58 : vector<16x1xf32> to vector<16x128xf32>
    %62 = vector.broadcast %25 : vector<1x128xf32> to vector<16x128xf32>
    %63 = arith.minimumf %61, %62 : vector<16x128xf32>
    %64 = vector.broadcast %56 : vector<16x1xf32> to vector<16x128xf32>
    %65 = vector.broadcast %21 : vector<1x128xf32> to vector<16x128xf32>
    %66 = arith.maximumf %64, %65 : vector<16x128xf32>
    %67 = arith.subf %63, %66 : vector<16x128xf32>
    %cst_14 = arith.constant 0.000000e+00 : f32
    %68 = vector.broadcast %cst_14 : f32 to vector<16x128xf32>
    %69 = arith.maximumf %67, %68 : vector<16x128xf32>
    %70 = vector.broadcast %59 : vector<16x1xf32> to vector<16x128xf32>
    %71 = vector.broadcast %26 : vector<1x128xf32> to vector<16x128xf32>
    %72 = arith.minimumf %70, %71 : vector<16x128xf32>
    %73 = vector.broadcast %57 : vector<16x1xf32> to vector<16x128xf32>
    %74 = vector.broadcast %22 : vector<1x128xf32> to vector<16x128xf32>
    %75 = arith.maximumf %73, %74 : vector<16x128xf32>
    %76 = arith.subf %72, %75 : vector<16x128xf32>
    %cst_15 = arith.constant 0.000000e+00 : f32
    %77 = vector.broadcast %cst_15 : f32 to vector<16x128xf32>
    %78 = arith.maximumf %76, %77 : vector<16x128xf32>
    %79 = arith.mulf %69, %78 : vector<16x128xf32>
    %80 = vector.broadcast %60 : vector<16x1xf32> to vector<16x128xf32>
    %81 = vector.broadcast %27 : vector<1x128xf32> to vector<16x128xf32>
    %82 = arith.addf %80, %81 : vector<16x128xf32>
    %83 = arith.subf %82, %79 : vector<16x128xf32>
    %84 = vector.broadcast %58 : vector<16x1xf32> to vector<16x128xf32>
    %85 = vector.broadcast %25 : vector<1x128xf32> to vector<16x128xf32>
    %86 = arith.maximumf %84, %85 : vector<16x128xf32>
    %87 = vector.broadcast %56 : vector<16x1xf32> to vector<16x128xf32>
    %88 = vector.broadcast %21 : vector<1x128xf32> to vector<16x128xf32>
    %89 = arith.minimumf %87, %88 : vector<16x128xf32>
    %90 = arith.subf %86, %89 : vector<16x128xf32>
    %cst_16 = arith.constant 0.000000e+00 : f32
    %91 = vector.broadcast %cst_16 : f32 to vector<16x128xf32>
    %92 = arith.maximumf %90, %91 : vector<16x128xf32>
    %93 = vector.broadcast %59 : vector<16x1xf32> to vector<16x128xf32>
    %94 = vector.broadcast %26 : vector<1x128xf32> to vector<16x128xf32>
    %95 = arith.maximumf %93, %94 : vector<16x128xf32>
    %96 = vector.broadcast %57 : vector<16x1xf32> to vector<16x128xf32>
    %97 = vector.broadcast %22 : vector<1x128xf32> to vector<16x128xf32>
    %98 = arith.minimumf %96, %97 : vector<16x128xf32>
    %99 = arith.subf %95, %98 : vector<16x128xf32>
    %cst_17 = arith.constant 0.000000e+00 : f32
    %100 = vector.broadcast %cst_17 : f32 to vector<16x128xf32>
    %101 = arith.maximumf %99, %100 : vector<16x128xf32>
    %102 = arith.mulf %92, %101 : vector<16x128xf32>
    %103 = arith.divf %79, %83 : vector<16x128xf32>
    %104 = arith.subf %102, %83 : vector<16x128xf32>
    %105 = arith.divf %104, %102 : vector<16x128xf32>
    %106 = arith.subf %103, %105 : vector<16x128xf32>
    %cst_18 = arith.constant 0.000000e+00 : f32
    %107 = vector.broadcast %cst_18 : f32 to vector<16x128xf32>
    %108 = arith.subf %107, %106 : vector<16x128xf32>
    %cst_19 = arith.constant 1.000000e+00 : f32
    %109 = vector.broadcast %cst_19 : f32 to vector<16x128xf32>
    %110 = arith.mulf %109, %108 : vector<16x128xf32>
    %111 = arith.addf %51, %110 : vector<16x128xf32>
    %c0_20 = arith.constant 0 : index
    %c0_21 = arith.constant 0 : index
    %112 = vector.load %arg5[%c0_20, %c0_21] : memref<16x128xf32, #tpu.memory_space<vmem>>, vector<16x128xf32>
    tpu.vector_store %arg5[%c0_20, %c0_21], %111 {strides = array<i32>} : memref<16x128xf32, #tpu.memory_space<vmem>>, vector<16x128xf32>,
    return
  }
  func.func @transform_0(%arg0: i32) -> (i32, i32) {
    %c0_i32 = arith.constant 0 : i32
    %c0_i32_0 = arith.constant 0 : i32
    return %arg0, %c0_i32 : i32, i32
  }
  func.func @transform_1(%arg0: i32) -> (i32, i32) {
    %c0_i32 = arith.constant 0 : i32
    %c0_i32_0 = arith.constant 0 : i32
    return %arg0, %c0_i32 : i32, i32
  }
  func.func @transform_2(%arg0: i32) -> (i32, i32) {
    %c0_i32 = arith.constant 0 : i32
    %c0_i32_0 = arith.constant 0 : i32
    %c0_i32_1 = arith.constant 0 : i32
    return %c0_i32, %c0_i32_0 : i32, i32
  }
  func.func @transform_3(%arg0: i32) -> (i32, i32) {
    %c0_i32 = arith.constant 0 : i32
    %c0_i32_0 = arith.constant 0 : i32
    %c0_i32_1 = arith.constant 0 : i32
    return %c0_i32, %c0_i32_0 : i32, i32
  }
  func.func @transform_4(%arg0: i32) -> (i32, i32) {
    %c0_i32 = arith.constant 0 : i32
    %c0_i32_0 = arith.constant 0 : i32
    return %arg0, %c0_i32 : i32, i32
  }
}

</mosaic_0001>

<llo_original>
// kernel: run.1
$region0: #{run.1}
  #allocation0 [shape = 'u32[]', space=smem, size = 0x4, offset = 0x4, fixed_abs, tag = 'smem constant byte address 0x4 - core index']
  #allocation1 [shape = 'u32[144,128]{1,0:T(1,128)}', space=vmem, size = 0x12000, scoped, tag = 'internal scratch']
  %s0 = inlined_call_operand.vmem [shape: f32[16,128], index: 0, kind: input, shape index: {}]
  %s1 = inlined_call_operand.vmem [shape: f32[16,4], index: 1, kind: input, shape index: {}]
  %s2 = inlined_call_operand.hbm [shape: f32[128,128], index: 2, kind: input, shape index: {}]
  %s3 = inlined_call_operand.vmem [shape: f32[8,128], index: 3, kind: input, shape index: {}]
  %s4 = inlined_call_operand.hbm [shape: f32[16,128], index: 4, kind: output, shape index: {}]
  %s5 = sld [smem:[#allocation0]]
  $region30: #{run.1} parent=0
    _
  %s7 = ssub.s32 1, %s5
  %s8 = scalar_select 0, %s7, %s5
  $region1: #{run.1} parent=0
    #allocation2 [shape = 'u8[65536]{0}', space=vmem, size = 0x10000, scoped, tag = 'input window, operand 2, single buffered']
    #allocation3 [shape = 's32[1]{0}', space=sflag, size = 0x4, scoped, tag = 'scoped memory for run.1']
    #allocation4 [shape = 's32[1]{0}', space=sflag, size = 0x4, scoped, tag = 'scoped memory for run.1']
    #allocation5 [shape = 'u8[8192]{0}', space=vmem, size = 0x2000, scoped, tag = 'output window, operand 0, single buffered']
    %9 = vsyncpa [#allocation3], 0
    %10 = vsyncpa [#allocation4], 0
    // Predicated region
    $region2: #{run.1} parent=1 // pred_check
      _
    $region3: #{run.1} parent=1 // pred_check_branch
      %12 = sbr.rel (0) target = $region5
    $region4: #{run.1} parent=1 // pred_region
      _
    $region5: #{run.1} parent=1 // pred_fallthru
      _
    // Predicated region
    $region6: #{run.1} parent=1 // pred_check
      _
    $region7: #{run.1} parent=1 // pred_check_branch
      %14 = sbr.rel (0) target = $region9
    $region8: #{run.1} parent=1 // pred_region
      _
    $region9: #{run.1} parent=1 // pred_fallthru
      _
    // Predicated region
    $region10: #{run.1} parent=1 // pred_check
      _
    $region11: #{run.1} parent=1 // pred_check_branch
      %16 = sbr.rel (0) target = $region13
    $region12: #{run.1} parent=1 // pred_region
      %s18 = ssub.s32 2048, 2048
      %19 = vsyncadd [#allocation3], %s18
      %s20 = sshll.u32 [#allocation2], 4
      %s21 = int_to_ptr.vmem [resolvable:$true] %s20
      %26 = dma.hbm_to_vmem [thread:$0]  %s2, 2048, %s21, [#allocation3], 128, 128, 8
    $region13: #{run.1} parent=1 // pred_fallthru
      _
    // Predicated region
    $region14: #{run.1} parent=1 // pred_check
      _
    $region15: #{run.1} parent=1 // pred_check_branch
      %28 = sbr.rel (0) target = $region17
    $region16: #{run.1} parent=1 // pred_region
      _
    $region17: #{run.1} parent=1 // pred_fallthru
      _
    // Predicated region
    $region18: #{run.1} parent=1 // pred_check
      _
    $region19: #{run.1} parent=1 // pred_check_branch
      %30 = sbr.rel (0) target = $region21
    $region20: #{run.1} parent=1 // pred_region
      %31 = dma.done [#allocation3], 2048
    $region21: #{run.1} parent=1 // pred_fallthru
      _
    %v32 = vld [vmem:[%s0] sm:$0xff]
    %v33 = vld [vmem:[%s0 + $0x8] sm:$0xff]
    %v34 = vld [vmem:[#allocation2] sm:$0xff]
    %v35 = vld [vmem:[#allocation2 + $0x8] sm:$0xff]
    %v36 = vld [vmem:[#allocation2 + $0x10] sm:$0xff]
    %v37 = vld [vmem:[#allocation2 + $0x18] sm:$0xff]
    %v38 = vld [vmem:[#allocation2 + $0x20] sm:$0xff]
    %v39 = vld [vmem:[#allocation2 + $0x28] sm:$0xff]
    %v40 = vld [vmem:[#allocation2 + $0x30] sm:$0xff]
    %v41 = vld [vmem:[#allocation2 + $0x38] sm:$0xff]
    %v42 = vld [vmem:[#allocation2 + $0x40] sm:$0xff]
    %v43 = vld [vmem:[#allocation2 + $0x48] sm:$0xff]
    %v44 = vld [vmem:[#allocation2 + $0x50] sm:$0xff]
    %v45 = vld [vmem:[#allocation2 + $0x58] sm:$0xff]
    %v46 = vld [vmem:[#allocation2 + $0x60] sm:$0xff]
    %v47 = vld [vmem:[#allocation2 + $0x68] sm:$0xff]
    %v48 = vld [vmem:[#allocation2 + $0x70] sm:$0xff]
    %v49 = vld [vmem:[#allocation2 + $0x78] sm:$0xff]
    %50 = vmax.xlane.f32.xlu0 %v32
    %v51 = vpop.xlane.xlu0 %50
    %52 = vmax.xlane.f32.xlu0 %v33
    %v53 = vpop.xlane.xlu0 %52
    %v54 = vsub.f32 %v32, %v51
    %v55 = vsub.f32 %v33, %v53
    %v56 = vmul.f32 %v54, 1.442695
    %v57 = vpow.pop %v56
    %v58 = vmul.f32 %v55, 1.442695
    %v59 = vpow.pop %v58
    %60 = vadd.xlane.f32.xlu0 %v57
    %v61 = vpop.xlane.xlu0 %60
    %62 = vadd.xlane.f32.xlu0 %v59
    %v63 = vpop.xlane.xlu0 %62
    %64 = vmatprep.subr.mxu0 0.0
    %65 = vmatpush1.msra.mxu0 %v49
    %66 = vmatprep.subr.mxu0 0.0
    %67 = vmatpush1.msra.mxu0 %v48
    %68 = vmatprep.subr.mxu0 0.0
    %69 = vmatpush1.msra.mxu0 %v47
    %70 = vmatprep.subr.mxu0 0.0
    %71 = vmatpush1.msra.mxu0 %v46
    %72 = vmatprep.subr.mxu0 0.0
    %73 = vmatpush1.msra.mxu0 %v45
    %74 = vmatprep.subr.mxu0 0.0
    %75 = vmatpush1.msra.mxu0 %v44
    %76 = vmatprep.subr.mxu0 0.0
    %77 = vmatpush1.msra.mxu0 %v43
    %78 = vmatprep.subr.mxu0 0.0
    %79 = vmatpush1.msra.mxu0 %v42
    %80 = vmatprep.subr.mxu0 0.0
    %81 = vmatpush1.msra.mxu0 %v41
    %82 = vmatprep.subr.mxu0 0.0
    %83 = vmatpush1.msra.mxu0 %v40
    %84 = vmatprep.subr.mxu0 0.0
    %85 = vmatpush1.msra.mxu0 %v39
    %86 = vmatprep.subr.mxu0 0.0
    %87 = vmatpush1.msra.mxu0 %v38
    %88 = vmatprep.subr.mxu0 0.0
    %89 = vmatpush1.msra.mxu0 %v37
    %90 = vmatprep.subr.mxu0 0.0
    %91 = vmatpush1.msra.mxu0 %v36
    %92 = vmatprep.subr.mxu0 0.0
    %93 = vmatpush1.msra.mxu0 %v35
    %94 = vmatprep.subr.mxu0 0.0
    %95 = vmatpush1.msra.mxu0 %v34
    %96 = vmatprep.subr.mxu0 0.0
    %97 = vmatpush2.msra.mxu0 0.0
    %98 = vmatprep.subr.mxu0 0.0
    %99 = vmatpush2.msra.mxu0 0.0
    %100 = vmatprep.subr.mxu0 0.0
    %101 = vmatpush2.msra.mxu0 0.0
    %102 = vmatprep.subr.mxu0 0.0
    %103 = vmatpush2.msra.mxu0 0.0
    %104 = vmatprep.subr.mxu0 0.0
    %105 = vmatpush2.msra.mxu0 0.0
    %106 = vmatprep.subr.mxu0 0.0
    %107 = vmatpush2.msra.mxu0 0.0
    %108 = vmatprep.subr.mxu0 0.0
    %109 = vmatpush2.msra.mxu0 0.0
    %110 = vmatprep.subr.mxu0 0.0
    %111 = vmatpush2.msra.mxu0 0.0
    %112 = vmatprep.subr.mxu0 0.0
    %113 = vmatpush2.msra.mxu0 0.0
    %114 = vmatprep.subr.mxu0 0.0
    %115 = vmatpush2.msra.mxu0 0.0
    %116 = vmatprep.subr.mxu0 0.0
    %117 = vmatpush2.msra.mxu0 0.0
    %118 = vmatprep.subr.mxu0 0.0
    %119 = vmatpush2.msra.mxu0 0.0
    %120 = vmatprep.subr.mxu0 0.0
    %121 = vmatpush2.msra.mxu0 0.0
    %122 = vmatprep.subr.mxu0 0.0
    %123 = vmatpush2.msra.mxu0 0.0
    %124 = vmatprep.subr.mxu0 0.0
    %125 = vmatpush2.msra.mxu0 0.0
    %126 = vmatprep.subr.mxu0 0.0
    %127 = vmatpush2.msra.mxu0 0.0
    %128 = vmatprep.mubr.f32.mxu0 0.0
    %129 = vmatmul.mubr.f32.gmra.mxu0 %v57
    %v130 = vpop.f32.mrf.mxu0
    %v131 = vadd.f32 0.0, %v130
    %v132 = vpop.f32.mrf.mxu0
    %133 = vmatprep.mubr.f32.mxu0 0.0
    %134 = vmatmul.mubr.f32.gmra.mxu0 %v59
    %v135 = vpop.f32.mrf.mxu0
    %v136 = vadd.f32 0.0, %v135
    %v137 = vpop.f32.mrf.mxu0
    %138 = vdwg.mxu0
    %v139 = vsub.f32 0.0, %v131
    %v140 = vsub.f32 0.0, %v136
    %v141 = vrcp.pop %v61
    %v142 = vrcp.pop %v63
    %v143 = vmul.f32 %v139, %v141
    %v144 = vmul.f32 %v140, %v142
    %v145 = vld [vmem:[%s1] sm:$0xff]
    %v146 = vld [vmem:[%s1 + $0x8] sm:$0xff]
    %v147 = vld [vmem:[%s3] sm:$0xff]
    %149 = vset.pattern.permute.xlu0 0
    %150 = vperm.xlu0 %149, %v145
    %v151 = vpop.permute.xlu0 %150
    %154 = vset.pattern.permute.xlu0 0
    %155 = vperm.xlu0 %154, %v146
    %v156 = vpop.permute.xlu0 %155
    %v158 = vlaneseq
    %v159 = vshrl.u32 %v158, 7
    %v160 = vsub.s32 0, %v159
    %v161 = vrot.slane %v147, %v160
    %v162 = vsub.f32 %v151, %v161
    %v163 = vsub.f32 %v156, %v161
    %v164 = vand.u32 2147483647, %v162
    %v165 = vand.u32 2147483647, %v163
    %166 = vset.pattern.permute.xlu0 1
    %167 = vperm.xlu0 %166, %v145
    %v168 = vpop.permute.xlu0 %167
    %170 = vset.pattern.permute.xlu0 1
    %171 = vperm.xlu0 %170, %v146
    %v172 = vpop.permute.xlu0 %171
    %v174 = vlaneseq
    %v175 = vshrl.u32 %v174, 7
    %v176 = vsub.s32 1, %v175
    %v177 = vrot.slane %v147, %v176
    %v178 = vsub.f32 %v168, %v177
    %v179 = vsub.f32 %v172, %v177
    %v180 = vand.u32 2147483647, %v178
    %v181 = vand.u32 2147483647, %v179
    %v182 = vadd.f32 %v164, %v180
    %v183 = vadd.f32 %v165, %v181
    %184 = vset.pattern.permute.xlu0 2
    %185 = vperm.xlu0 %184, %v145
    %v186 = vpop.permute.xlu0 %185
    %188 = vset.pattern.permute.xlu0 2
    %189 = vperm.xlu0 %188, %v146
    %v190 = vpop.permute.xlu0 %189
    %v192 = vlaneseq
    %v193 = vshrl.u32 %v192, 7
    %v194 = vsub.s32 2, %v193
    %v195 = vrot.slane %v147, %v194
    %v196 = vsub.f32 %v186, %v195
    %v197 = vsub.f32 %v190, %v195
    %v198 = vand.u32 2147483647, %v196
    %v199 = vand.u32 2147483647, %v197
    %v200 = vadd.f32 %v182, %v198
    %v201 = vadd.f32 %v183, %v199
    %202 = vset.pattern.permute.xlu0 3
    %203 = vperm.xlu0 %202, %v145
    %v204 = vpop.permute.xlu0 %203
    %206 = vset.pattern.permute.xlu0 3
    %207 = vperm.xlu0 %206, %v146
    %v208 = vpop.permute.xlu0 %207
    %v210 = vlaneseq
    %v211 = vshrl.u32 %v210, 7
    %v212 = vsub.s32 3, %v211
    %v213 = vrot.slane %v147, %v212
    %v214 = vsub.f32 %v204, %v213
    %v215 = vsub.f32 %v208, %v213
    %v216 = vand.u32 2147483647, %v214
    %v217 = vand.u32 2147483647, %v215
    %v218 = vadd.f32 %v200, %v216
    %v219 = vadd.f32 %v201, %v217
    %v220 = vadd.f32 %v218, %v143
    %v221 = vadd.f32 %v219, %v144
    %v222 = vmul.f32 %v145, 0.5
    %v223 = vmul.f32 %v146, 0.5
    %226 = vrot.lane.b32.xlu0 %v222, 126
    %v227 = vpop.permute.xlu0 %226
    %228 = vrot.lane.b32.xlu0 %v223, 126
    %v229 = vpop.permute.xlu0 %228
    %v232 = vsub.f32 %v145, %v227
    %v233 = vsub.f32 %v146, %v229
    %v234 = vadd.f32 %v145, %v227
    %v235 = vadd.f32 %v146, %v229
    %236 = vrot.lane.b32.xlu0 %v145, 127
    %v237 = vpop.permute.xlu0 %236
    %238 = vrot.lane.b32.xlu0 %v146, 127
    %v239 = vpop.permute.xlu0 %238
    %v242 = vmul.f32 %v145, %v237
    %v243 = vmul.f32 %v146, %v239
    %245 = vset.pattern.permute.xlu0 0
    %246 = vperm.xlu0 %245, %v234
    %v247 = vpop.permute.xlu0 %246
    %250 = vset.pattern.permute.xlu0 0
    %251 = vperm.xlu0 %250, %v235
    %v252 = vpop.permute.xlu0 %251
    %v254 = vlaneseq
    %v255 = vshrl.u32 %v254, 7
    %v256 = vsub.s32 4, %v255
    %v257 = vrot.slane %v147, %v256
    %v258 = vmin.f32 %v247, %v257
    %v259 = vmin.f32 %v252, %v257
    %261 = vset.pattern.permute.xlu0 0
    %262 = vperm.xlu0 %261, %v232
    %v263 = vpop.permute.xlu0 %262
    %266 = vset.pattern.permute.xlu0 0
    %267 = vperm.xlu0 %266, %v233
    %v268 = vpop.permute.xlu0 %267
    %v270 = vmax.f32 %v263, %v161
    %v271 = vmax.f32 %v268, %v161
    %v272 = vsub.f32 %v258, %v270
    %v273 = vsub.f32 %v259, %v271
    %v274 = vmax.f32 %v272, 0.0
    %v275 = vmax.f32 %v273, 0.0
    %276 = vset.pattern.permute.xlu0 1
    %277 = vperm.xlu0 %276, %v234
    %v278 = vpop.permute.xlu0 %277
    %280 = vset.pattern.permute.xlu0 1
    %281 = vperm.xlu0 %280, %v235
    %v282 = vpop.permute.xlu0 %281
    %v284 = vlaneseq
    %v285 = vshrl.u32 %v284, 7
    %v286 = vsub.s32 5, %v285
    %v287 = vrot.slane %v147, %v286
    %v288 = vmin.f32 %v278, %v287
    %v289 = vmin.f32 %v282, %v287
    %290 = vset.pattern.permute.xlu0 1
    %291 = vperm.xlu0 %290, %v232
    %v292 = vpop.permute.xlu0 %291
    %294 = vset.pattern.permute.xlu0 1
    %295 = vperm.xlu0 %294, %v233
    %v296 = vpop.permute.xlu0 %295
    %v298 = vmax.f32 %v292, %v177
    %v299 = vmax.f32 %v296, %v177
    %v300 = vsub.f32 %v288, %v298
    %v301 = vsub.f32 %v289, %v299
    %v302 = vmax.f32 %v300, 0.0
    %v303 = vmax.f32 %v301, 0.0
    %v304 = vmul.f32 %v274, %v302
    %v305 = vmul.f32 %v275, %v303
    %307 = vset.pattern.permute.xlu0 2
    %308 = vperm.xlu0 %307, %v242
    %v309 = vpop.permute.xlu0 %308
    %312 = vset.pattern.permute.xlu0 2
    %313 = vperm.xlu0 %312, %v243
    %v314 = vpop.permute.xlu0 %313
    %v316 = vlaneseq
    %v317 = vshrl.u32 %v316, 7
    %v318 = vsub.s32 6, %v317
    %v319 = vrot.slane %v147, %v318
    %v320 = vadd.f32 %v309, %v319
    %v321 = vadd.f32 %v314, %v319
    %v322 = vsub.f32 %v320, %v304
    %v323 = vsub.f32 %v321, %v305
    %v324 = vmax.f32 %v247, %v257
    %v325 = vmax.f32 %v252, %v257
    %v326 = vmin.f32 %v263, %v161
    %v327 = vmin.f32 %v268, %v161
    %v328 = vsub.f32 %v324, %v326
    %v329 = vsub.f32 %v325, %v327
    %v330 = vmax.f32 %v328, 0.0
    %v331 = vmax.f32 %v329, 0.0
    %v332 = vmax.f32 %v278, %v287
    %v333 = vmax.f32 %v282, %v287
    %v334 = vmin.f32 %v292, %v177
    %v335 = vmin.f32 %v296, %v177
    %v336 = vsub.f32 %v332, %v334
    %v337 = vsub.f32 %v333, %v335
    %v338 = vmax.f32 %v336, 0.0
    %v339 = vmax.f32 %v337, 0.0
    %v340 = vmul.f32 %v330, %v338
    %v341 = vmul.f32 %v331, %v339
    %v342 = vrcp.pop %v322
    %v343 = vmul.f32 %v304, %v342
    %v344 = vrcp.pop %v323
    %v345 = vmul.f32 %v305, %v344
    %v346 = vsub.f32 %v340, %v322
    %v347 = vsub.f32 %v341, %v323
    %v348 = vrcp.pop %v340
    %v349 = vmul.f32 %v346, %v348
    %v350 = vrcp.pop %v341
    %v351 = vmul.f32 %v347, %v350
    %v352 = vsub.f32 %v343, %v349
    %v353 = vsub.f32 %v345, %v351
    %v354 = vsub.f32 0.0, %v352
    %v355 = vsub.f32 0.0, %v353
    %v356 = vadd.f32 %v220, %v354
    %v357 = vadd.f32 %v221, %v355
    %358 = vst [vmem:[#allocation5] sm:$0xff] %v356
    %359 = vst [vmem:[#allocation5 + $0x8] sm:$0xff] %v357
    // Predicated region
    $region22: #{run.1} parent=1 // pred_check
      _
    $region23: #{run.1} parent=1 // pred_check_branch
      %361 = sbr.rel (0) target = $region25
    $region24: #{run.1} parent=1 // pred_region
      %s363 = ssub.s32 256, 256
      %364 = vsyncadd [#allocation4], %s363
      %s365 = sshll.u32 [#allocation5], 4
      %s366 = int_to_ptr.vmem [resolvable:$true] %s365
      %371 = dma.vmem_to_hbm [thread:$0]  %s366, 256, %s4, [#allocation4], 128, 128, 8
    $region25: #{run.1} parent=1 // pred_fallthru
      _
    // Predicated region
    $region26: #{run.1} parent=1 // pred_check
      _
    $region27: #{run.1} parent=1 // pred_check_branch
      %373 = sbr.rel (0) target = $region29
    $region28: #{run.1} parent=1 // pred_region
      %374 = dma.done [#allocation4], 256
    $region29: #{run.1} parent=1 // pred_fallthru
      _
    %375 = vsyncpa [#allocation3], 1
    %376 = vsyncpa [#allocation4], 1

</llo_original>
